<compile_context>
chip_gen: v7x
topology: tpu7x:2x2x1
jax: 0.10.0
libtpu: 0.0.40
codegen_flags: <defaults>
</compile_context>

<pallas_src>
import jax
import jax.numpy as jnp
from jax.experimental import pallas as pl
from jax.experimental.pallas import tpu as pltpu


def _log_sigmoid(x):
    # Single-branch, numerically stable: log(sigmoid(x)) = -softplus(-x)
    #                                   = -(max(-x, 0) + log1p(exp(-|x|)))
    return -(jnp.maximum(-x, 0.0) + jnp.log1p(jnp.exp(-jnp.abs(x))))


def _cbow_kernel(pos_v_idx, pos_u_idx, neg_v_idx, neg_u_idx,   # SMEM prefetch
                 v_tab, u_tab,                                 # VMEM (full tables)
                 loss_ref,                                     # SMEM (1, 1)
                 u_buf):                                       # VMEM scratch (B+Bn, D)
    C = pos_v_idx.shape[0]
    Cn = neg_v_idx.shape[0]
    B = pos_u_idx.shape[0]
    Bn = neg_u_idx.shape[0]
    D = v_tab.shape[1]

    # --- Context means (only the LAST window contributes; PyTorch quirk) ---
    # torch.mean(i, dim=0, keepdim=True) -> (1, D)
    pos_sum = jnp.zeros((1, D), jnp.float32)
    for i in range(C):
        pos_sum = pos_sum + v_tab[pl.ds(pos_v_idx[i], 1), :]
    neg_sum = jnp.zeros((1, D), jnp.float32)
    for i in range(Cn):
        neg_sum = neg_sum + v_tab[pl.ds(neg_v_idx[i], 1), :]
    pos_v = pos_sum * (1.0 / C)
    neg_v = neg_sum * (1.0 / Cn)

    # --- Gather target / negative "u" rows into one contiguous slab --------
    for i in range(B):
        u_buf[pl.ds(i, 1), :] = u_tab[pl.ds(pos_u_idx[i], 1), :]
    for i in range(Bn):
        u_buf[pl.ds(B + i, 1), :] = u_tab[pl.ds(neg_u_idx[i], 1), :]

    # --- One fused MXU matmul: (B+Bn, D) x (2, D)^T -> (B+Bn, 2) -----------
    # Column 0 = pos score, column 1 = (already sign-flipped) neg score.
    rhs = jnp.concatenate([pos_v, -neg_v], axis=0)                 # (2, D)
    dn = (((1,), (1,)), ((), ()))
    z = jax.lax.dot_general(u_buf[...], rhs, dn,
                            preferred_element_type=jnp.float32)    # (B+Bn, 2)

    # Positive rows take column 0, negative rows take column 1, then a single
    # log_sigmoid over B+Bn values (no lane-slice, just mask + 2-lane reduce).
    row = jax.lax.broadcasted_iota(jnp.int32, (B + Bn, 2), 0)
    col = jax.lax.broadcasted_iota(jnp.int32, (B + Bn, 2), 1)
    sel = (col == jnp.where(row < B, 0, 1)).astype(jnp.float32)
    zsel = jnp.sum(z * sel, axis=1, keepdims=True)                 # (B+Bn, 1)

    loss_ref[0, 0] = -jnp.sum(_log_sigmoid(zsel))


def cbow_loss_pallas(v_weight, u_weight, pos_ctx_idx, pos_u_idx,
                     neg_ctx_idx, neg_u_idx,
                     *, vmem_table_budget_bytes=32 * 1024 * 1024):
    C = int(pos_ctx_idx.shape[0])
    Cn = int(neg_ctx_idx.shape[0])
    B = int(pos_u_idx.shape[0])
    Bn = int(neg_u_idx.shape[0])
    V = int(v_weight.shape[0])
    D = int(v_weight.shape[1])

    table_bytes = (v_weight.size + u_weight.size) * 4
    if table_bytes > vmem_table_budget_bytes:
        # TODO(synk): realistic-vocab path — keep tables in HBM (pl.ANY), tile
        # the negatives over a "parallel" grid axis with (2, T, D) double-
        # buffered bf16 row-gather DMAs (one semaphore per slot, not per row),
        # and an SMEM loss accumulator with @pl.when init/finalize; size T for
        # v7x's 64 MiB VMEM and set vmem_limit_bytes explicitly.
        raise NotImplementedError(
            "embedding tables exceed the VMEM budget; HBM-gather path not implemented")

    grid_spec = pltpu.PrefetchScalarGridSpec(
        num_scalar_prefetch=4,
        grid=(1,),
        in_specs=[
            # Whole embedding tables resident in VMEM for the single grid step.
            pl.BlockSpec((V, D), lambda i, *_: (0, 0)),   # v_embedding table
            pl.BlockSpec((V, D), lambda i, *_: (0, 0)),   # u_embedding table
        ],
        out_specs=pl.BlockSpec(memory_space=pltpu.SMEM),
        scratch_shapes=[
            pltpu.VMEM((B + Bn, D), jnp.float32),         # gathered u rows
        ],
    )
    out = pl.pallas_call(
        _cbow_kernel,
        out_shape=jax.ShapeDtypeStruct((1, 1), jnp.float32),
        grid_spec=grid_spec,
        compiler_params=pltpu.CompilerParams(
            dimension_semantics=("arbitrary",)),
    )(pos_ctx_idx.astype(jnp.int32), pos_u_idx.astype(jnp.int32),
      neg_ctx_idx.astype(jnp.int32), neg_u_idx.astype(jnp.int32),
      v_weight.astype(jnp.float32), u_weight.astype(jnp.float32))
    return out[0, 0]


class COBWPallas:
    """JAX/Pallas re-implementation of the PyTorch COBW module (neg_model=True)."""

    def __init__(self, embedding_dim, vocab_size, key):
        # v_embedding_matrix: xavier_uniform init (deterministic via PRNGKey)
        bound = (6.0 / (vocab_size + embedding_dim)) ** 0.5
        self.v_weight = jax.random.uniform(
            key, (vocab_size, embedding_dim),
            minval=-bound, maxval=bound, dtype=jnp.float32)
        # u_embedding_matrix: uniform_(0, 0) -> all zeros
        self.u_weight = jnp.zeros((vocab_size, embedding_dim), dtype=jnp.float32)

    def forward(self, pos_v, pos_u, neg_v, neg_u):
        # pos_v / neg_v: (num_windows, C) int32 context-window indices
        # pos_u / neg_u: (B,) / (Bn,) int32 target / negative-sample indices
        # Only the LAST context window contributes (PyTorch module quirk).
        return cbow_loss_pallas(self.v_weight, self.u_weight,
                                pos_v[-1], pos_u, neg_v[-1], neg_u)


def _ref_loss(v_w, u_w, pos_v, pos_u, neg_v, neg_u):
    """Pure-JAX reference of the same (quirky) forward semantics."""
    pv = jnp.mean(v_w[pos_v[-1]], axis=0, keepdims=True)
    nv = jnp.mean(v_w[neg_v[-1]], axis=0, keepdims=True)
    pz = jnp.sum(pv * u_w[pos_u], axis=1, keepdims=True)
    nz = jnp.sum(nv * u_w[neg_u], axis=1, keepdims=True)
    return -(jnp.sum(jax.nn.log_sigmoid(pz)) + jnp.sum(jax.nn.log_sigmoid(-nz)))


if __name__ == "__main__":
    embedding_dim = 128   # lane-dense: D is a multiple of 128
    vocab_size = 64
    B = 8                 # number of positive (context-window, target) pairs
    C = 8                 # context window size
    Bn = 8                # number of negative samples

    key = jax.random.PRNGKey(0)
    k_w, k_u, k_pv, k_pu, k_nv, k_nu = jax.random.split(key, 6)

    model = COBWPallas(embedding_dim, vocab_size, k_w)

    pos_v = jax.random.randint(k_pv, (B, C), 0, vocab_size, dtype=jnp.int32)
    pos_u = jax.random.randint(k_pu, (B,), 0, vocab_size, dtype=jnp.int32)
    neg_v = jax.random.randint(k_nv, (B, C), 0, vocab_size, dtype=jnp.int32)
    neg_u = jax.random.randint(k_nu, (Bn,), 0, vocab_size, dtype=jnp.int32)

    # Faithful model (u-embeddings init'd to zeros, like the PyTorch module).
    loss = jax.block_until_ready(model.forward(pos_v, pos_u, neg_v, neg_u))
    ref = _ref_loss(model.v_weight, model.u_weight, pos_v, pos_u, neg_v, neg_u)
    assert jnp.allclose(loss, ref, rtol=1e-4, atol=1e-4), (loss, ref)

    # Extra check with non-zero u-embeddings so the u-gather and fused MXU-dot
    # path is actually exercised (the faithful zero init makes u trivial).
    model.u_weight = 0.1 * jax.random.normal(
        k_u, (vocab_size, embedding_dim), dtype=jnp.float32)
    loss2 = jax.block_until_ready(model.forward(pos_v, pos_u, neg_v, neg_u))
    ref2 = _ref_loss(model.v_weight, model.u_weight, pos_v, pos_u, neg_v, neg_u)
    assert jnp.allclose(loss2, ref2, rtol=1e-4, atol=1e-4), (loss2, ref2)

    print("KERNEL_OK")
</pallas_src>

<mosaic_0001>
module attributes {stable_mosaic.version = 11 : i64} {
  func.func @_cbow_kernel(%arg0: i32, %arg1: memref<8xi32, #tpu.memory_space<smem>>, %arg2: memref<8xi32, #tpu.memory_space<smem>>, %arg3: memref<8xi32, #tpu.memory_space<smem>>, %arg4: memref<8xi32, #tpu.memory_space<smem>>, %arg5: memref<64x128xf32, #tpu.memory_space<vmem>>, %arg6: memref<64x128xf32, #tpu.memory_space<vmem>>, %arg7: memref<1x1xf32, #tpu.memory_space<smem>>, %arg8: memref<16x128xf32, #tpu.memory_space<vmem>>) attributes {dimension_semantics = [#tpu.dimension_semantics<arbitrary>], iteration_bounds = array<i64: 1>, scalar_prefetch = 4 : i64, scratch_operands = 1 : i64, tpu.core_type = #tpu.core_type<tc>, window_params = [{pipeline_mode = #tpu.pipeline_mode<synchronous>, transform_indices = @transform_0, window_bounds = array<i64: 64, 128>}, {pipeline_mode = #tpu.pipeline_mode<synchronous>, transform_indices = @transform_1, window_bounds = array<i64: 64, 128>}, {transform_indices = @transform_2, window_bounds = array<i64: 1, 1>}]} {
    %cst = arith.constant 0.000000e+00 : f32
    %0 = vector.broadcast %cst : f32 to vector<1x128xf32>
    %c0 = arith.constant 0 : index
    %1 = memref.load %arg1[%c0] : memref<8xi32, #tpu.memory_space<smem>>
    %2 = arith.index_cast %1 : i32 to index
    %c0_0 = arith.constant 0 : index
    %3 = vector.load %arg5[%2, %c0_0] : memref<64x128xf32, #tpu.memory_space<vmem>>, vector<1x128xf32>
    %4 = arith.addf %0, %3 : vector<1x128xf32>
    %c1 = arith.constant 1 : index
    %5 = memref.load %arg1[%c1] : memref<8xi32, #tpu.memory_space<smem>>
    %6 = arith.index_cast %5 : i32 to index
    %c0_1 = arith.constant 0 : index
    %7 = vector.load %arg5[%6, %c0_1] : memref<64x128xf32, #tpu.memory_space<vmem>>, vector<1x128xf32>
    %8 = arith.addf %4, %7 : vector<1x128xf32>
    %c2 = arith.constant 2 : index
    %9 = memref.load %arg1[%c2] : memref<8xi32, #tpu.memory_space<smem>>
    %10 = arith.index_cast %9 : i32 to index
    %c0_2 = arith.constant 0 : index
    %11 = vector.load %arg5[%10, %c0_2] : memref<64x128xf32, #tpu.memory_space<vmem>>, vector<1x128xf32>
    %12 = arith.addf %8, %11 : vector<1x128xf32>
    %c3 = arith.constant 3 : index
    %13 = memref.load %arg1[%c3] : memref<8xi32, #tpu.memory_space<smem>>
    %14 = arith.index_cast %13 : i32 to index
    %c0_3 = arith.constant 0 : index
    %15 = vector.load %arg5[%14, %c0_3] : memref<64x128xf32, #tpu.memory_space<vmem>>, vector<1x128xf32>
    %16 = arith.addf %12, %15 : vector<1x128xf32>
    %c4 = arith.constant 4 : index
    %17 = memref.load %arg1[%c4] : memref<8xi32, #tpu.memory_space<smem>>
    %18 = arith.index_cast %17 : i32 to index
    %c0_4 = arith.constant 0 : index
    %19 = vector.load %arg5[%18, %c0_4] : memref<64x128xf32, #tpu.memory_space<vmem>>, vector<1x128xf32>
    %20 = arith.addf %16, %19 : vector<1x128xf32>
    %c5 = arith.constant 5 : index
    %21 = memref.load %arg1[%c5] : memref<8xi32, #tpu.memory_space<smem>>
    %22 = arith.index_cast %21 : i32 to index
    %c0_5 = arith.constant 0 : index
    %23 = vector.load %arg5[%22, %c0_5] : memref<64x128xf32, #tpu.memory_space<vmem>>, vector<1x128xf32>
    %24 = arith.addf %20, %23 : vector<1x128xf32>
    %c6 = arith.constant 6 : index
    %25 = memref.load %arg1[%c6] : memref<8xi32, #tpu.memory_space<smem>>
    %26 = arith.index_cast %25 : i32 to index
    %c0_6 = arith.constant 0 : index
    %27 = vector.load %arg5[%26, %c0_6] : memref<64x128xf32, #tpu.memory_space<vmem>>, vector<1x128xf32>
    %28 = arith.addf %24, %27 : vector<1x128xf32>
    %c7 = arith.constant 7 : index
    %29 = memref.load %arg1[%c7] : memref<8xi32, #tpu.memory_space<smem>>
    %30 = arith.index_cast %29 : i32 to index
    %c0_7 = arith.constant 0 : index
    %31 = vector.load %arg5[%30, %c0_7] : memref<64x128xf32, #tpu.memory_space<vmem>>, vector<1x128xf32>
    %32 = arith.addf %28, %31 : vector<1x128xf32>
    %cst_8 = arith.constant 0.000000e+00 : f32
    %33 = vector.broadcast %cst_8 : f32 to vector<1x128xf32>
    %c0_9 = arith.constant 0 : index
    %34 = memref.load %arg3[%c0_9] : memref<8xi32, #tpu.memory_space<smem>>
    %35 = arith.index_cast %34 : i32 to index
    %c0_10 = arith.constant 0 : index
    %36 = vector.load %arg5[%35, %c0_10] : memref<64x128xf32, #tpu.memory_space<vmem>>, vector<1x128xf32>
    %37 = arith.addf %33, %36 : vector<1x128xf32>
    %c1_11 = arith.constant 1 : index
    %38 = memref.load %arg3[%c1_11] : memref<8xi32, #tpu.memory_space<smem>>
    %39 = arith.index_cast %38 : i32 to index
    %c0_12 = arith.constant 0 : index
    %40 = vector.load %arg5[%39, %c0_12] : memref<64x128xf32, #tpu.memory_space<vmem>>, vector<1x128xf32>
    %41 = arith.addf %37, %40 : vector<1x128xf32>
    %c2_13 = arith.constant 2 : index
    %42 = memref.load %arg3[%c2_13] : memref<8xi32, #tpu.memory_space<smem>>
    %43 = arith.index_cast %42 : i32 to index
    %c0_14 = arith.constant 0 : index
    %44 = vector.load %arg5[%43, %c0_14] : memref<64x128xf32, #tpu.memory_space<vmem>>, vector<1x128xf32>
    %45 = arith.addf %41, %44 : vector<1x128xf32>
    %c3_15 = arith.constant 3 : index
    %46 = memref.load %arg3[%c3_15] : memref<8xi32, #tpu.memory_space<smem>>
    %47 = arith.index_cast %46 : i32 to index
    %c0_16 = arith.constant 0 : index
    %48 = vector.load %arg5[%47, %c0_16] : memref<64x128xf32, #tpu.memory_space<vmem>>, vector<1x128xf32>
    %49 = arith.addf %45, %48 : vector<1x128xf32>
    %c4_17 = arith.constant 4 : index
    %50 = memref.load %arg3[%c4_17] : memref<8xi32, #tpu.memory_space<smem>>
    %51 = arith.index_cast %50 : i32 to index
    %c0_18 = arith.constant 0 : index
    %52 = vector.load %arg5[%51, %c0_18] : memref<64x128xf32, #tpu.memory_space<vmem>>, vector<1x128xf32>
    %53 = arith.addf %49, %52 : vector<1x128xf32>
    %c5_19 = arith.constant 5 : index
    %54 = memref.load %arg3[%c5_19] : memref<8xi32, #tpu.memory_space<smem>>
    %55 = arith.index_cast %54 : i32 to index
    %c0_20 = arith.constant 0 : index
    %56 = vector.load %arg5[%55, %c0_20] : memref<64x128xf32, #tpu.memory_space<vmem>>, vector<1x128xf32>
    %57 = arith.addf %53, %56 : vector<1x128xf32>
    %c6_21 = arith.constant 6 : index
    %58 = memref.load %arg3[%c6_21] : memref<8xi32, #tpu.memory_space<smem>>
    %59 = arith.index_cast %58 : i32 to index
    %c0_22 = arith.constant 0 : index
    %60 = vector.load %arg5[%59, %c0_22] : memref<64x128xf32, #tpu.memory_space<vmem>>, vector<1x128xf32>
    %61 = arith.addf %57, %60 : vector<1x128xf32>
    %c7_23 = arith.constant 7 : index
    %62 = memref.load %arg3[%c7_23] : memref<8xi32, #tpu.memory_space<smem>>
    %63 = arith.index_cast %62 : i32 to index
    %c0_24 = arith.constant 0 : index
    %64 = vector.load %arg5[%63, %c0_24] : memref<64x128xf32, #tpu.memory_space<vmem>>, vector<1x128xf32>
    %65 = arith.addf %61, %64 : vector<1x128xf32>
    %cst_25 = arith.constant 1.250000e-01 : f32
    %66 = vector.broadcast %cst_25 : f32 to vector<1x128xf32>
    %67 = arith.mulf %32, %66 : vector<1x128xf32>
    %cst_26 = arith.constant 1.250000e-01 : f32
    %68 = vector.broadcast %cst_26 : f32 to vector<1x128xf32>
    %69 = arith.mulf %65, %68 : vector<1x128xf32>
    %c0_27 = arith.constant 0 : index
    %70 = memref.load %arg2[%c0_27] : memref<8xi32, #tpu.memory_space<smem>>
    %71 = arith.index_cast %70 : i32 to index
    %c0_28 = arith.constant 0 : index
    %72 = vector.load %arg6[%71, %c0_28] : memref<64x128xf32, #tpu.memory_space<vmem>>, vector<1x128xf32>
    %c0_29 = arith.constant 0 : index
    %c0_30 = arith.constant 0 : index
    %73 = vector.load %arg8[%c0_29, %c0_30] : memref<16x128xf32, #tpu.memory_space<vmem>>, vector<1x128xf32>
    tpu.vector_store %arg8[%c0_29, %c0_30], %72 {strides = array<i32>} : memref<16x128xf32, #tpu.memory_space<vmem>>, vector<1x128xf32>,
    %c1_31 = arith.constant 1 : index
    %74 = memref.load %arg2[%c1_31] : memref<8xi32, #tpu.memory_space<smem>>
    %75 = arith.index_cast %74 : i32 to index
    %c0_32 = arith.constant 0 : index
    %76 = vector.load %arg6[%75, %c0_32] : memref<64x128xf32, #tpu.memory_space<vmem>>, vector<1x128xf32>
    %c1_33 = arith.constant 1 : index
    %c0_34 = arith.constant 0 : index
    %77 = vector.load %arg8[%c1_33, %c0_34] : memref<16x128xf32, #tpu.memory_space<vmem>>, vector<1x128xf32>
    tpu.vector_store %arg8[%c1_33, %c0_34], %76 {strides = array<i32>} : memref<16x128xf32, #tpu.memory_space<vmem>>, vector<1x128xf32>,
    %c2_35 = arith.constant 2 : index
    %78 = memref.load %arg2[%c2_35] : memref<8xi32, #tpu.memory_space<smem>>
    %79 = arith.index_cast %78 : i32 to index
    %c0_36 = arith.constant 0 : index
    %80 = vector.load %arg6[%79, %c0_36] : memref<64x128xf32, #tpu.memory_space<vmem>>, vector<1x128xf32>
    %c2_37 = arith.constant 2 : index
    %c0_38 = arith.constant 0 : index
    %81 = vector.load %arg8[%c2_37, %c0_38] : memref<16x128xf32, #tpu.memory_space<vmem>>, vector<1x128xf32>
    tpu.vector_store %arg8[%c2_37, %c0_38], %80 {strides = array<i32>} : memref<16x128xf32, #tpu.memory_space<vmem>>, vector<1x128xf32>,
    %c3_39 = arith.constant 3 : index
    %82 = memref.load %arg2[%c3_39] : memref<8xi32, #tpu.memory_space<smem>>
    %83 = arith.index_cast %82 : i32 to index
    %c0_40 = arith.constant 0 : index
    %84 = vector.load %arg6[%83, %c0_40] : memref<64x128xf32, #tpu.memory_space<vmem>>, vector<1x128xf32>
    %c3_41 = arith.constant 3 : index
    %c0_42 = arith.constant 0 : index
    %85 = vector.load %arg8[%c3_41, %c0_42] : memref<16x128xf32, #tpu.memory_space<vmem>>, vector<1x128xf32>
    tpu.vector_store %arg8[%c3_41, %c0_42], %84 {strides = array<i32>} : memref<16x128xf32, #tpu.memory_space<vmem>>, vector<1x128xf32>,
    %c4_43 = arith.constant 4 : index
    %86 = memref.load %arg2[%c4_43] : memref<8xi32, #tpu.memory_space<smem>>
    %87 = arith.index_cast %86 : i32 to index
    %c0_44 = arith.constant 0 : index
    %88 = vector.load %arg6[%87, %c0_44] : memref<64x128xf32, #tpu.memory_space<vmem>>, vector<1x128xf32>
    %c4_45 = arith.constant 4 : index
    %c0_46 = arith.constant 0 : index
    %89 = vector.load %arg8[%c4_45, %c0_46] : memref<16x128xf32, #tpu.memory_space<vmem>>, vector<1x128xf32>
    tpu.vector_store %arg8[%c4_45, %c0_46], %88 {strides = array<i32>} : memref<16x128xf32, #tpu.memory_space<vmem>>, vector<1x128xf32>,
    %c5_47 = arith.constant 5 : index
    %90 = memref.load %arg2[%c5_47] : memref<8xi32, #tpu.memory_space<smem>>
    %91 = arith.index_cast %90 : i32 to index
    %c0_48 = arith.constant 0 : index
    %92 = vector.load %arg6[%91, %c0_48] : memref<64x128xf32, #tpu.memory_space<vmem>>, vector<1x128xf32>
    %c5_49 = arith.constant 5 : index
    %c0_50 = arith.constant 0 : index
    %93 = vector.load %arg8[%c5_49, %c0_50] : memref<16x128xf32, #tpu.memory_space<vmem>>, vector<1x128xf32>
    tpu.vector_store %arg8[%c5_49, %c0_50], %92 {strides = array<i32>} : memref<16x128xf32, #tpu.memory_space<vmem>>, vector<1x128xf32>,
    %c6_51 = arith.constant 6 : index
    %94 = memref.load %arg2[%c6_51] : memref<8xi32, #tpu.memory_space<smem>>
    %95 = arith.index_cast %94 : i32 to index
    %c0_52 = arith.constant 0 : index
    %96 = vector.load %arg6[%95, %c0_52] : memref<64x128xf32, #tpu.memory_space<vmem>>, vector<1x128xf32>
    %c6_53 = arith.constant 6 : index
    %c0_54 = arith.constant 0 : index
    %97 = vector.load %arg8[%c6_53, %c0_54] : memref<16x128xf32, #tpu.memory_space<vmem>>, vector<1x128xf32>
    tpu.vector_store %arg8[%c6_53, %c0_54], %96 {strides = array<i32>} : memref<16x128xf32, #tpu.memory_space<vmem>>, vector<1x128xf32>,
    %c7_55 = arith.constant 7 : index
    %98 = memref.load %arg2[%c7_55] : memref<8xi32, #tpu.memory_space<smem>>
    %99 = arith.index_cast %98 : i32 to index
    %c0_56 = arith.constant 0 : index
    %100 = vector.load %arg6[%99, %c0_56] : memref<64x128xf32, #tpu.memory_space<vmem>>, vector<1x128xf32>
    %c7_57 = arith.constant 7 : index
    %c0_58 = arith.constant 0 : index
    %101 = vector.load %arg8[%c7_57, %c0_58] : memref<16x128xf32, #tpu.memory_space<vmem>>, vector<1x128xf32>
    tpu.vector_store %arg8[%c7_57, %c0_58], %100 {strides = array<i32>} : memref<16x128xf32, #tpu.memory_space<vmem>>, vector<1x128xf32>,
    %c0_59 = arith.constant 0 : index
    %102 = memref.load %arg4[%c0_59] : memref<8xi32, #tpu.memory_space<smem>>
    %103 = arith.index_cast %102 : i32 to index
    %c0_60 = arith.constant 0 : index
    %104 = vector.load %arg6[%103, %c0_60] : memref<64x128xf32, #tpu.memory_space<vmem>>, vector<1x128xf32>
    %c8 = arith.constant 8 : index
    %c0_61 = arith.constant 0 : index
    %105 = vector.load %arg8[%c8, %c0_61] : memref<16x128xf32, #tpu.memory_space<vmem>>, vector<1x128xf32>
    tpu.vector_store %arg8[%c8, %c0_61], %104 {strides = array<i32>} : memref<16x128xf32, #tpu.memory_space<vmem>>, vector<1x128xf32>,
    %c1_62 = arith.constant 1 : index
    %106 = memref.load %arg4[%c1_62] : memref<8xi32, #tpu.memory_space<smem>>
    %107 = arith.index_cast %106 : i32 to index
    %c0_63 = arith.constant 0 : index
    %108 = vector.load %arg6[%107, %c0_63] : memref<64x128xf32, #tpu.memory_space<vmem>>, vector<1x128xf32>
    %c9 = arith.constant 9 : index
    %c0_64 = arith.constant 0 : index
    %109 = vector.load %arg8[%c9, %c0_64] : memref<16x128xf32, #tpu.memory_space<vmem>>, vector<1x128xf32>
    tpu.vector_store %arg8[%c9, %c0_64], %108 {strides = array<i32>} : memref<16x128xf32, #tpu.memory_space<vmem>>, vector<1x128xf32>,
    %c2_65 = arith.constant 2 : index
    %110 = memref.load %arg4[%c2_65] : memref<8xi32, #tpu.memory_space<smem>>
    %111 = arith.index_cast %110 : i32 to index
    %c0_66 = arith.constant 0 : index
    %112 = vector.load %arg6[%111, %c0_66] : memref<64x128xf32, #tpu.memory_space<vmem>>, vector<1x128xf32>
    %c10 = arith.constant 10 : index
    %c0_67 = arith.constant 0 : index
    %113 = vector.load %arg8[%c10, %c0_67] : memref<16x128xf32, #tpu.memory_space<vmem>>, vector<1x128xf32>
    tpu.vector_store %arg8[%c10, %c0_67], %112 {strides = array<i32>} : memref<16x128xf32, #tpu.memory_space<vmem>>, vector<1x128xf32>,
    %c3_68 = arith.constant 3 : index
    %114 = memref.load %arg4[%c3_68] : memref<8xi32, #tpu.memory_space<smem>>
    %115 = arith.index_cast %114 : i32 to index
    %c0_69 = arith.constant 0 : index
    %116 = vector.load %arg6[%115, %c0_69] : memref<64x128xf32, #tpu.memory_space<vmem>>, vector<1x128xf32>
    %c11 = arith.constant 11 : index
    %c0_70 = arith.constant 0 : index
    %117 = vector.load %arg8[%c11, %c0_70] : memref<16x128xf32, #tpu.memory_space<vmem>>, vector<1x128xf32>
    tpu.vector_store %arg8[%c11, %c0_70], %116 {strides = array<i32>} : memref<16x128xf32, #tpu.memory_space<vmem>>, vector<1x128xf32>,
    %c4_71 = arith.constant 4 : index
    %118 = memref.load %arg4[%c4_71] : memref<8xi32, #tpu.memory_space<smem>>
    %119 = arith.index_cast %118 : i32 to index
    %c0_72 = arith.constant 0 : index
    %120 = vector.load %arg6[%119, %c0_72] : memref<64x128xf32, #tpu.memory_space<vmem>>, vector<1x128xf32>
    %c12 = arith.constant 12 : index
    %c0_73 = arith.constant 0 : index
    %121 = vector.load %arg8[%c12, %c0_73] : memref<16x128xf32, #tpu.memory_space<vmem>>, vector<1x128xf32>
    tpu.vector_store %arg8[%c12, %c0_73], %120 {strides = array<i32>} : memref<16x128xf32, #tpu.memory_space<vmem>>, vector<1x128xf32>,
    %c5_74 = arith.constant 5 : index
    %122 = memref.load %arg4[%c5_74] : memref<8xi32, #tpu.memory_space<smem>>
    %123 = arith.index_cast %122 : i32 to index
    %c0_75 = arith.constant 0 : index
    %124 = vector.load %arg6[%123, %c0_75] : memref<64x128xf32, #tpu.memory_space<vmem>>, vector<1x128xf32>
    %c13 = arith.constant 13 : index
    %c0_76 = arith.constant 0 : index
    %125 = vector.load %arg8[%c13, %c0_76] : memref<16x128xf32, #tpu.memory_space<vmem>>, vector<1x128xf32>
    tpu.vector_store %arg8[%c13, %c0_76], %124 {strides = array<i32>} : memref<16x128xf32, #tpu.memory_space<vmem>>, vector<1x128xf32>,
    %c6_77 = arith.constant 6 : index
    %126 = memref.load %arg4[%c6_77] : memref<8xi32, #tpu.memory_space<smem>>
    %127 = arith.index_cast %126 : i32 to index
    %c0_78 = arith.constant 0 : index
    %128 = vector.load %arg6[%127, %c0_78] : memref<64x128xf32, #tpu.memory_space<vmem>>, vector<1x128xf32>
    %c14 = arith.constant 14 : index
    %c0_79 = arith.constant 0 : index
    %129 = vector.load %arg8[%c14, %c0_79] : memref<16x128xf32, #tpu.memory_space<vmem>>, vector<1x128xf32>
    tpu.vector_store %arg8[%c14, %c0_79], %128 {strides = array<i32>} : memref<16x128xf32, #tpu.memory_space<vmem>>, vector<1x128xf32>,
    %c7_80 = arith.constant 7 : index
    %130 = memref.load %arg4[%c7_80] : memref<8xi32, #tpu.memory_space<smem>>
    %131 = arith.index_cast %130 : i32 to index
    %c0_81 = arith.constant 0 : index
    %132 = vector.load %arg6[%131, %c0_81] : memref<64x128xf32, #tpu.memory_space<vmem>>, vector<1x128xf32>
    %c15 = arith.constant 15 : index
    %c0_82 = arith.constant 0 : index
    %133 = vector.load %arg8[%c15, %c0_82] : memref<16x128xf32, #tpu.memory_space<vmem>>, vector<1x128xf32>
    tpu.vector_store %arg8[%c15, %c0_82], %132 {strides = array<i32>} : memref<16x128xf32, #tpu.memory_space<vmem>>, vector<1x128xf32>,
    %cst_83 = arith.constant 0.000000e+00 : f32
    %134 = vector.broadcast %cst_83 : f32 to vector<1x128xf32>
    %135 = arith.subf %134, %69 : vector<1x128xf32>
    %136 = tpu.concatenate %67, %135 in 0 : vector<1x128xf32>, vector<1x128xf32> -> vector<2x128xf32>
    %c0_84 = arith.constant 0 : index
    %c0_85 = arith.constant 0 : index
    %137 = vector.load %arg8[%c0_84, %c0_85] : memref<16x128xf32, #tpu.memory_space<vmem>>, vector<16x128xf32>
    %cst_86 = arith.constant dense<0.000000e+00> : vector<16x2xf32>
    %138 = tpu.matmul %137, %136, %cst_86 {dimension_numbers = #tpu.dot_dimension_numbers<[1], [1], [0], [0], [0, 0, 1, 0], [], []>} : vector<16x128xf32>, vector<2x128xf32>, vector<16x2xf32> -> vector<16x2xf32>
    %139 = tpu.iota {dimensions = array<i32: 0>} : vector<16x2xi32>
    %140 = tpu.iota {dimensions = array<i32: 1>} : vector<16x2xi32>
    %c8_i32 = arith.constant 8 : i32
    %141 = vector.broadcast %c8_i32 : i32 to vector<16x2xi32>
    %142 = arith.cmpi slt, %139, %141 : vector<16x2xi32>
    %c0_i32 = arith.constant 0 : i32
    %c1_i32 = arith.constant 1 : i32
    %143 = vector.broadcast %c0_i32 : i32 to vector<16x2xi32>
    %144 = vector.broadcast %c1_i32 : i32 to vector<16x2xi32>
    %145 = arith.select %142, %143, %144 : vector<16x2xi1>, vector<16x2xi32>
    %146 = arith.cmpi eq, %140, %145 : vector<16x2xi32>
    %147 = arith.extui %146 : vector<16x2xi1> to vector<16x2xi32>
    %148 = arith.sitofp %147 : vector<16x2xi32> to vector<16x2xf32>
    %149 = arith.mulf %138, %148 : vector<16x2xf32>
    %cst_87 = arith.constant dense<0.000000e+00> : vector<16xf32>
    %150 = vector.multi_reduction <add>, %149, %cst_87 [1] : vector<16x2xf32> to vector<16xf32>
    %151 = vector.shape_cast %150 : vector<16xf32> to vector<16x1xf32>
    %cst_88 = arith.constant 0.000000e+00 : f32
    %152 = vector.broadcast %cst_88 : f32 to vector<16x1xf32>
    %153 = arith.subf %152, %151 : vector<16x1xf32>
    %cst_89 = arith.constant 0.000000e+00 : f32
    %154 = vector.broadcast %cst_89 : f32 to vector<16x1xf32>
    %155 = arith.maximumf %153, %154 : vector<16x1xf32>
    %156 = math.absf %151 : vector<16x1xf32>
    %cst_90 = arith.constant 0.000000e+00 : f32
    %157 = vector.broadcast %cst_90 : f32 to vector<16x1xf32>
    %158 = arith.subf %157, %156 : vector<16x1xf32>
    %159 = math.exp %158 : vector<16x1xf32>
    %160 = math.log1p %159 : vector<16x1xf32>
    %161 = arith.addf %155, %160 : vector<16x1xf32>
    %cst_91 = arith.constant 0.000000e+00 : f32
    %162 = vector.broadcast %cst_91 : f32 to vector<16x1xf32>
    %163 = arith.subf %162, %161 : vector<16x1xf32>
    %164 = vector.shape_cast %163 : vector<16x1xf32> to vector<1x16x1xf32>
    %cst_92 = arith.constant dense<0.000000e+00> : vector<1xf32>
    %165 = vector.multi_reduction <add>, %164, %cst_92 [1, 2] : vector<1x16x1xf32> to vector<1xf32>
    %166 = vector.shape_cast %165 : vector<1xf32> to vector<1x1x1xf32>
    %167 = vector.extract %166[0, 0, 0] : f32 from vector<1x1x1xf32>
    %cst_93 = arith.constant 0.000000e+00 : f32
    %168 = arith.subf %cst_93, %167 : f32
    %c0_94 = arith.constant 0 : index
    %c0_95 = arith.constant 0 : index
    %169 = memref.load %arg7[%c0_94, %c0_95] : memref<1x1xf32, #tpu.memory_space<smem>>
    memref.store %168, %arg7[%c0_94, %c0_95] : memref<1x1xf32, #tpu.memory_space<smem>>
    return
  }
  func.func @transform_0(%arg0: i32, %arg1: memref<8xi32, #tpu.memory_space<smem>>, %arg2: memref<8xi32, #tpu.memory_space<smem>>, %arg3: memref<8xi32, #tpu.memory_space<smem>>, %arg4: memref<8xi32, #tpu.memory_space<smem>>) -> (i32, i32) {
    %c0_i32 = arith.constant 0 : i32
    %c0_i32_0 = arith.constant 0 : i32
    %c0_i32_1 = arith.constant 0 : i32
    return %c0_i32, %c0_i32_0 : i32, i32
  }
  func.func @transform_1(%arg0: i32, %arg1: memref<8xi32, #tpu.memory_space<smem>>, %arg2: memref<8xi32, #tpu.memory_space<smem>>, %arg3: memref<8xi32, #tpu.memory_space<smem>>, %arg4: memref<8xi32, #tpu.memory_space<smem>>) -> (i32, i32) {
    %c0_i32 = arith.constant 0 : i32
    %c0_i32_0 = arith.constant 0 : i32
    %c0_i32_1 = arith.constant 0 : i32
    return %c0_i32, %c0_i32_0 : i32, i32
  }
  func.func @transform_2(%arg0: i32, %arg1: memref<8xi32, #tpu.memory_space<smem>>, %arg2: memref<8xi32, #tpu.memory_space<smem>>, %arg3: memref<8xi32, #tpu.memory_space<smem>>, %arg4: memref<8xi32, #tpu.memory_space<smem>>) -> (i32, i32) {
    %c0_i32 = arith.constant 0 : i32
    %c0_i32_0 = arith.constant 0 : i32
    %c0_i32_1 = arith.constant 0 : i32
    return %c0_i32, %c0_i32_0 : i32, i32
  }
}

</mosaic_0001>

<llo_original>
// kernel: tpu_custom_call.1
$region0: #{tpu_custom_call.1}
  #allocation0 [shape = 'u32[]', space=smem, size = 0x4, offset = 0x4, fixed_abs, tag = 'smem constant byte address 0x4 - core index']
  #allocation1 [shape = 'u32[144,128]{1,0:T(1,128)}', space=vmem, size = 0x12000, scoped, tag = 'internal scratch']
  #allocation2 [shape = 'f32[16,128]{1,0:T(8,128)}', space=vmem, size = 0x2000, scoped, tag = 'scratch operand']
  #allocation3 [shape = 's32[1]{0}', space=sflag, size = 0x4, scoped, tag = 'scoped memory for tpu_custom_call.1']
  #allocation4 [shape = 'u8[512]{0}', space=smem, size = 0x200, scoped, tag = 'prefetched SMEM operand 0']
  #allocation5 [shape = 'u8[512]{0}', space=smem, size = 0x200, scoped, tag = 'prefetched SMEM operand 1']
  #allocation6 [shape = 'u8[512]{0}', space=smem, size = 0x200, scoped, tag = 'prefetched SMEM operand 2']
  #allocation7 [shape = 'u8[512]{0}', space=smem, size = 0x200, scoped, tag = 'prefetched SMEM operand 3']
  %s0 = inlined_call_operand.hbm [shape: s32[8], index: 0, kind: input, shape index: {}]
  %s1 = inlined_call_operand.vmem [shape: s32[8], index: 1, kind: input, shape index: {}]
  %s2 = inlined_call_operand.vmem [shape: s32[8], index: 2, kind: input, shape index: {}]
  %s3 = inlined_call_operand.vmem [shape: s32[8], index: 3, kind: input, shape index: {}]
  %s4 = inlined_call_operand.hbm [shape: f32[64,128], index: 4, kind: input, shape index: {}]
  %s5 = inlined_call_operand.hbm [shape: f32[64,128], index: 5, kind: input, shape index: {}]
  %s6 = inlined_call_operand.hbm [shape: f32[1,1], index: 6, kind: output, shape index: {}]
  %s7 = sld [smem:[#allocation0]]
  $region26: #{tpu_custom_call.1} parent=0
    _
  %s9 = ssub.s32 1, %s7
  %s10 = scalar_select 0, %s9, %s7
  %12 = dma.hbm_to_smem %s0, 16, [#allocation4], [#allocation3]
  %s13 = sshll.u32 %s1, 4
  %s14 = int_to_ptr.vmem [resolvable:$true] %s13
  %16 = dma.vmem_to_smem %s14, 16, [#allocation5], [#allocation3]
  %s17 = sshll.u32 %s2, 4
  %s18 = int_to_ptr.vmem [resolvable:$true] %s17
  %20 = dma.vmem_to_smem %s18, 16, [#allocation6], [#allocation3]
  %s21 = sshll.u32 %s3, 4
  %s22 = int_to_ptr.vmem [resolvable:$true] %s21
  %24 = dma.vmem_to_smem %s22, 16, [#allocation7], [#allocation3]
  %25 = dma.done [#allocation3], 64
  %26 = sfence
  $region1: #{tpu_custom_call.1} parent=0
    #allocation8 [shape = 'u8[32768]{0}', space=vmem, size = 0x8000, scoped, tag = 'input window, operand 4, single buffered']
    #allocation9 [shape = 's32[1]{0}', space=sflag, size = 0x4, scoped, tag = 'scoped memory for tpu_custom_call.1']
    #allocation10 [shape = 's32[1]{0}', space=sflag, size = 0x4, scoped, tag = 'scoped memory for tpu_custom_call.1']
    #allocation11 [shape = 'u8[32768]{0}', space=vmem, size = 0x8000, scoped, tag = 'input window, operand 5, single buffered']
    #allocation12 [shape = 's32[1]{0}', space=sflag, size = 0x4, scoped, tag = 'scoped memory for tpu_custom_call.1']
    #allocation13 [shape = 'u8[512]{0}', space=smem, size = 0x200, scoped, tag = 'output window, operand 0, single buffered']
    %27 = vsyncpa [#allocation9], 0
    %28 = vsyncpa [#allocation12], 0
    %29 = vsyncpa [#allocation10], 0
    // Predicated region
    $region2: #{tpu_custom_call.1} parent=1 // pred_check
      _
    $region3: #{tpu_custom_call.1} parent=1 // pred_check_branch
      %31 = sbr.rel (0) target = $region5
    $region4: #{tpu_custom_call.1} parent=1 // pred_region
      %s33 = ssub.s32 1024, 1024
      %34 = vsyncadd [#allocation9], %s33
      %s35 = sshll.u32 [#allocation8], 4
      %s36 = int_to_ptr.vmem [resolvable:$true] %s35
      %41 = dma.hbm_to_vmem [thread:$0]  %s4, 1024, %s36, [#allocation9], 128, 128, 8
    $region5: #{tpu_custom_call.1} parent=1 // pred_fallthru
      _
    // Predicated region
    $region6: #{tpu_custom_call.1} parent=1 // pred_check
      _
    $region7: #{tpu_custom_call.1} parent=1 // pred_check_branch
      %43 = sbr.rel (0) target = $region9
    $region8: #{tpu_custom_call.1} parent=1 // pred_region
      %s45 = ssub.s32 1024, 1024
      %46 = vsyncadd [#allocation12], %s45
      %s47 = sshll.u32 [#allocation11], 4
      %s48 = int_to_ptr.vmem [resolvable:$true] %s47
      %53 = dma.hbm_to_vmem [thread:$0]  %s5, 1024, %s48, [#allocation12], 128, 128, 8
    $region9: #{tpu_custom_call.1} parent=1 // pred_fallthru
      _
    // Predicated region
    $region10: #{tpu_custom_call.1} parent=1 // pred_check
      _
    $region11: #{tpu_custom_call.1} parent=1 // pred_check_branch
      %55 = sbr.rel (0) target = $region13
    $region12: #{tpu_custom_call.1} parent=1 // pred_region
      %56 = dma.done [#allocation9], 1024
    $region13: #{tpu_custom_call.1} parent=1 // pred_fallthru
      _
    // Predicated region
    $region14: #{tpu_custom_call.1} parent=1 // pred_check
      _
    $region15: #{tpu_custom_call.1} parent=1 // pred_check_branch
      %58 = sbr.rel (0) target = $region17
    $region16: #{tpu_custom_call.1} parent=1 // pred_region
      %59 = dma.done [#allocation12], 1024
    $region17: #{tpu_custom_call.1} parent=1 // pred_fallthru
      _
    %s60 = sld [smem:[#allocation4]]
    %s61 = scalar_lea.vmem [#allocation8], %s60
    %v62 = vld [vmem:[%s61] sm:$0x1]
    %v63 = vadd.f32 %v62, 0.0
    %s64 = sld [smem:[#allocation4 + $0x1]]
    %s65 = scalar_lea.vmem [#allocation8], %s64
    %v66 = vld [vmem:[%s65] sm:$0x1]
    %v67 = vadd.f32 %v63, %v66
    %s68 = sld [smem:[#allocation4 + $0x2]]
    %s69 = scalar_lea.vmem [#allocation8], %s68
    %v70 = vld [vmem:[%s69] sm:$0x1]
    %v71 = vadd.f32 %v67, %v70
    %s72 = sld [smem:[#allocation4 + $0x3]]
    %s73 = scalar_lea.vmem [#allocation8], %s72
    %v74 = vld [vmem:[%s73] sm:$0x1]
    %v75 = vadd.f32 %v71, %v74
    %s76 = sld [smem:[#allocation4 + $0x4]]
    %s77 = scalar_lea.vmem [#allocation8], %s76
    %v78 = vld [vmem:[%s77] sm:$0x1]
    %v79 = vadd.f32 %v75, %v78
    %s80 = sld [smem:[#allocation4 + $0x5]]
    %s81 = scalar_lea.vmem [#allocation8], %s80
    %v82 = vld [vmem:[%s81] sm:$0x1]
    %v83 = vadd.f32 %v79, %v82
    %s84 = sld [smem:[#allocation4 + $0x6]]
    %s85 = scalar_lea.vmem [#allocation8], %s84
    %v86 = vld [vmem:[%s85] sm:$0x1]
    %v87 = vadd.f32 %v83, %v86
    %s88 = sld [smem:[#allocation4 + $0x7]]
    %s89 = scalar_lea.vmem [#allocation8], %s88
    %v90 = vld [vmem:[%s89] sm:$0x1]
    %v91 = vadd.f32 %v87, %v90
    %s92 = sld [smem:[#allocation6]]
    %s93 = scalar_lea.vmem [#allocation8], %s92
    %v94 = vld [vmem:[%s93] sm:$0x1]
    %v95 = vadd.f32 %v94, 0.0
    %s96 = sld [smem:[#allocation6 + $0x1]]
    %s97 = scalar_lea.vmem [#allocation8], %s96
    %v98 = vld [vmem:[%s97] sm:$0x1]
    %v99 = vadd.f32 %v95, %v98
    %s100 = sld [smem:[#allocation6 + $0x2]]
    %s101 = scalar_lea.vmem [#allocation8], %s100
    %v102 = vld [vmem:[%s101] sm:$0x1]
    %v103 = vadd.f32 %v99, %v102
    %s104 = sld [smem:[#allocation6 + $0x3]]
    %s105 = scalar_lea.vmem [#allocation8], %s104
    %v106 = vld [vmem:[%s105] sm:$0x1]
    %v107 = vadd.f32 %v103, %v106
    %s108 = sld [smem:[#allocation6 + $0x4]]
    %s109 = scalar_lea.vmem [#allocation8], %s108
    %v110 = vld [vmem:[%s109] sm:$0x1]
    %v111 = vadd.f32 %v107, %v110
    %s112 = sld [smem:[#allocation6 + $0x5]]
    %s113 = scalar_lea.vmem [#allocation8], %s112
    %v114 = vld [vmem:[%s113] sm:$0x1]
    %v115 = vadd.f32 %v111, %v114
    %s116 = sld [smem:[#allocation6 + $0x6]]
    %s117 = scalar_lea.vmem [#allocation8], %s116
    %v118 = vld [vmem:[%s117] sm:$0x1]
    %v119 = vadd.f32 %v115, %v118
    %s120 = sld [smem:[#allocation6 + $0x7]]
    %s121 = scalar_lea.vmem [#allocation8], %s120
    %v122 = vld [vmem:[%s121] sm:$0x1]
    %v123 = vadd.f32 %v119, %v122
    %v124 = vmul.f32 %v91, 0.125
    %v125 = vmul.f32 %v123, 0.125
    %s126 = sld [smem:[#allocation5]]
    %s127 = scalar_lea.vmem [#allocation11], %s126
    %v128 = vld [vmem:[%s127] sm:$0x1]
    %129 = vst [vmem:[#allocation2] sm:$0x1] %v128
    %s130 = sld [smem:[#allocation5 + $0x1]]
    %s131 = scalar_lea.vmem [#allocation11], %s130
    %v132 = vld [vmem:[%s131] sm:$0x1]
    %133 = vst [vmem:[#allocation2 + $0x1] sm:$0x1] %v132
    %s134 = sld [smem:[#allocation5 + $0x2]]
    %s135 = scalar_lea.vmem [#allocation11], %s134
    %v136 = vld [vmem:[%s135] sm:$0x1]
    %137 = vst [vmem:[#allocation2 + $0x2] sm:$0x1] %v136
    %s138 = sld [smem:[#allocation5 + $0x3]]
    %s139 = scalar_lea.vmem [#allocation11], %s138
    %v140 = vld [vmem:[%s139] sm:$0x1]
    %141 = vst [vmem:[#allocation2 + $0x3] sm:$0x1] %v140
    %s142 = sld [smem:[#allocation5 + $0x4]]
    %s143 = scalar_lea.vmem [#allocation11], %s142
    %v144 = vld [vmem:[%s143] sm:$0x1]
    %145 = vst [vmem:[#allocation2 + $0x4] sm:$0x1] %v144
    %s146 = sld [smem:[#allocation5 + $0x5]]
    %s147 = scalar_lea.vmem [#allocation11], %s146
    %v148 = vld [vmem:[%s147] sm:$0x1]
    %149 = vst [vmem:[#allocation2 + $0x5] sm:$0x1] %v148
    %s150 = sld [smem:[#allocation5 + $0x6]]
    %s151 = scalar_lea.vmem [#allocation11], %s150
    %v152 = vld [vmem:[%s151] sm:$0x1]
    %153 = vst [vmem:[#allocation2 + $0x6] sm:$0x1] %v152
    %s154 = sld [smem:[#allocation5 + $0x7]]
    %s155 = scalar_lea.vmem [#allocation11], %s154
    %v156 = vld [vmem:[%s155] sm:$0x1]
    %157 = vst [vmem:[#allocation2 + $0x7] sm:$0x1] %v156
    %s158 = sld [smem:[#allocation7]]
    %s159 = scalar_lea.vmem [#allocation11], %s158
    %v160 = vld [vmem:[%s159] sm:$0x1]
    %161 = vst [vmem:[#allocation2 + $0x8] sm:$0x1] %v160
    %s162 = sld [smem:[#allocation7 + $0x1]]
    %s163 = scalar_lea.vmem [#allocation11], %s162
    %v164 = vld [vmem:[%s163] sm:$0x1]
    %165 = vst [vmem:[#allocation2 + $0x9] sm:$0x1] %v164
    %s166 = sld [smem:[#allocation7 + $0x2]]
    %s167 = scalar_lea.vmem [#allocation11], %s166
    %v168 = vld [vmem:[%s167] sm:$0x1]
    %169 = vst [vmem:[#allocation2 + $0xa] sm:$0x1] %v168
    %s170 = sld [smem:[#allocation7 + $0x3]]
    %s171 = scalar_lea.vmem [#allocation11], %s170
    %v172 = vld [vmem:[%s171] sm:$0x1]
    %173 = vst [vmem:[#allocation2 + $0xb] sm:$0x1] %v172
    %s174 = sld [smem:[#allocation7 + $0x4]]
    %s175 = scalar_lea.vmem [#allocation11], %s174
    %v176 = vld [vmem:[%s175] sm:$0x1]
    %177 = vst [vmem:[#allocation2 + $0xc] sm:$0x1] %v176
    %s178 = sld [smem:[#allocation7 + $0x5]]
    %s179 = scalar_lea.vmem [#allocation11], %s178
    %v180 = vld [vmem:[%s179] sm:$0x1]
    %181 = vst [vmem:[#allocation2 + $0xd] sm:$0x1] %v180
    %s182 = sld [smem:[#allocation7 + $0x6]]
    %s183 = scalar_lea.vmem [#allocation11], %s182
    %v184 = vld [vmem:[%s183] sm:$0x1]
    %185 = vst [vmem:[#allocation2 + $0xe] sm:$0x1] %v184
    %s186 = sld [smem:[#allocation7 + $0x7]]
    %s187 = scalar_lea.vmem [#allocation11], %s186
    %v188 = vld [vmem:[%s187] sm:$0x1]
    %189 = vst [vmem:[#allocation2 + $0xf] sm:$0x1] %v188
    %v190 = vsub.f32 0.0, %v125
    %v192 = vrot.slane %v190, 7
    %vm194 = vcmask 1040384
    %v195 = vsel %vm194, %v124, %v192
    %v196 = vld [vmem:[#allocation2] sm:$0xff]
    %v197 = vld [vmem:[#allocation2 + $0x8] sm:$0xff]
    %198 = vmatprep.subr.mxu0 0.0
    %199 = vmatpush1.xpose.msra.mxu0 %v195
    %200 = vmatprep.subr.mxu0 0.0
    %201 = vmatpush1.xpose.msra.mxu0 0.0
    %202 = vmatprep.subr.mxu0 0.0
    %203 = vmatpush1.xpose.msra.mxu0 0.0
    %204 = vmatprep.subr.mxu0 0.0
    %205 = vmatpush1.xpose.msra.mxu0 0.0
    %206 = vmatprep.subr.mxu0 0.0
    %207 = vmatpush1.xpose.msra.mxu0 0.0
    %208 = vmatprep.subr.mxu0 0.0
    %209 = vmatpush1.xpose.msra.mxu0 0.0
    %210 = vmatprep.subr.mxu0 0.0
    %211 = vmatpush1.xpose.msra.mxu0 0.0
    %212 = vmatprep.subr.mxu0 0.0
    %213 = vmatpush1.xpose.msra.mxu0 0.0
    %214 = vmatprep.subr.mxu0 0.0
    %215 = vmatpush1.xpose.msra.mxu0 0.0
    %216 = vmatprep.subr.mxu0 0.0
    %217 = vmatpush1.xpose.msra.mxu0 0.0
    %218 = vmatprep.subr.mxu0 0.0
    %219 = vmatpush1.xpose.msra.mxu0 0.0
    %220 = vmatprep.subr.mxu0 0.0
    %221 = vmatpush1.xpose.msra.mxu0 0.0
    %222 = vmatprep.subr.mxu0 0.0
    %223 = vmatpush1.xpose.msra.mxu0 0.0
    %224 = vmatprep.subr.mxu0 0.0
    %225 = vmatpush1.xpose.msra.mxu0 0.0
    %226 = vmatprep.subr.mxu0 0.0
    %227 = vmatpush1.xpose.msra.mxu0 0.0
    %228 = vmatprep.subr.mxu0 0.0
    %229 = vmatpush1.xpose.msra.mxu0 0.0
    %230 = vmatprep.subr.mxu0 0.0
    %231 = vmatpush1.xpose.msra.mxu0 0.0
    %232 = vmatprep.subr.mxu0 0.0
    %233 = vmatpush1.xpose.msra.mxu0 0.0
    %234 = vmatprep.subr.mxu0 0.0
    %235 = vmatpush1.xpose.msra.mxu0 0.0
    %236 = vmatprep.subr.mxu0 0.0
    %237 = vmatpush1.xpose.msra.mxu0 0.0
    %238 = vmatprep.subr.mxu0 0.0
    %239 = vmatpush1.xpose.msra.mxu0 0.0
    %240 = vmatprep.subr.mxu0 0.0
    %241 = vmatpush1.xpose.msra.mxu0 0.0
    %242 = vmatprep.subr.mxu0 0.0
    %243 = vmatpush1.xpose.msra.mxu0 0.0
    %244 = vmatprep.subr.mxu0 0.0
    %245 = vmatpush1.xpose.msra.mxu0 0.0
    %246 = vmatprep.subr.mxu0 0.0
    %247 = vmatpush1.xpose.msra.mxu0 0.0
    %248 = vmatprep.subr.mxu0 0.0
    %249 = vmatpush1.xpose.msra.mxu0 0.0
    %250 = vmatprep.subr.mxu0 0.0
    %251 = vmatpush1.xpose.msra.mxu0 0.0
    %252 = vmatprep.subr.mxu0 0.0
    %253 = vmatpush1.xpose.msra.mxu0 0.0
    %254 = vmatprep.subr.mxu0 0.0
    %255 = vmatpush1.xpose.msra.mxu0 0.0
    %256 = vmatprep.subr.mxu0 0.0
    %257 = vmatpush1.xpose.msra.mxu0 0.0
    %258 = vmatprep.subr.mxu0 0.0
    %259 = vmatpush1.xpose.msra.mxu0 0.0
    %260 = vmatprep.subr.mxu0 0.0
    %261 = vmatpush1.xpose.msra.mxu0 0.0
    %262 = vmatprep.mubr.f32.mxu0 0.0
    %263 = vmatmul.mubr.f32.gmra.mrb[0].mxu0 %v196
    %v264 = vpop.f32.mrb[0].mxu0
    %v265 = vadd.f32 0.0, %v264
    %v266 = vpop.f32.mrb[0].mxu0
    %267 = vmatprep.mubr.f32.mxu0 0.0
    %268 = vmatmul.mubr.f32.gmra.mrb[0].mxu0 %v197
    %v269 = vpop.f32.mrb[0].mxu0
    %v270 = vadd.f32 0.0, %v269
    %v271 = vpop.f32.mrb[0].mxu0
    %272 = vdwg.mxu0
    %v273 = vlaneseq
    %v274 = vshrl.u32 %v273, 7
    %v275 = vadd.s32 %v274, 8
    %v276 = vlaneseq
    %v277 = vand.u32 %v276, 127
    %vm278 = vcmp.lt.s32.totalorder %v274, 8
    %vm279 = vcmp.lt.s32.totalorder %v275, 8
    %v280 = vsel %vm278, 0, 1
    %v281 = vsel %vm279, 0, 1
    %vm282 = vcmp.eq.s32.totalorder %v277, %v280
    %vm283 = vcmp.eq.s32.totalorder %v277, %v281
    %v284 = vsel %vm282, 1, 0
    %v285 = vsel %vm283, 1, 0
    %v286 = vcvt.s32.f32 %v284
    %v287 = vcvt.s32.f32 %v285
    %v288 = vmul.f32 %v265, %v286
    %v289 = vmul.f32 %v270, %v287
    %vm290 = vcmask 15360
    %v291 = vsel %vm290, %v288, 0.0
    %292 = vadd.xlane.f32.xlu0 %v291
    %v293 = vpop.xlane.xlu0 %292
    %v294 = vsel %vm290, %v289, 0.0
    %295 = vadd.xlane.f32.xlu0 %v294
    %v296 = vpop.xlane.xlu0 %295
    %v297 = vsub.f32 0.0, %v293
    %v298 = vsub.f32 0.0, %v296
    %v299 = vmax.f32 %v297, 0.0
    %v300 = vmax.f32 %v298, 0.0
    %v301 = vand.u32 2147483647, %v293
    %v302 = vand.u32 2147483647, %v296
    %v303 = vsub.f32 0.0, %v301
    %v304 = vsub.f32 0.0, %v302
    %v305 = vmul.f32 %v303, 1.442695
    %v306 = vpow.pop %v305
    %v307 = vmul.f32 %v304, 1.442695
    %v308 = vpow.pop %v307
    %v309 = vadd.f32 %v306, 1.0
    %v310 = vlog2.pop %v309
    %v311 = vmul.f32 %v310, 0.6931472
    %v312 = vmul.f32 -0.5, %v306
    %v313 = vadd.f32 %v312, 1.0
    %v314 = vmul.f32 %v313, %v306
    %v315 = vand.u32 2147483647, %v306
    %vm316 = vcmp.lt.f32.partialorder %v315, 0.0004427343
    %v317 = vsel %vm316, %v314, %v311
    %v318 = vadd.f32 %v308, 1.0
    %v319 = vlog2.pop %v318
    %v320 = vmul.f32 %v319, 0.6931472
    %v321 = vmul.f32 -0.5, %v308
    %v322 = vadd.f32 %v321, 1.0
    %v323 = vmul.f32 %v322, %v308
    %v324 = vand.u32 2147483647, %v308
    %vm325 = vcmp.lt.f32.partialorder %v324, 0.0004427343
    %v326 = vsel %vm325, %v323, %v320
    %v327 = vadd.f32 %v299, %v317
    %v328 = vadd.f32 %v300, %v326
    %v329 = vsub.f32 0.0, %v327
    %v330 = vsub.f32 0.0, %v328
    %vm331 = vcmask 7168
    %v332 = vsel %vm331, %v329, 0.0
    %v333 = vsel %vm331, %v330, 0.0
    %v334 = vadd.f32 %v332, %v333
    %335 = vadd.xlane.f32.xlu0 %v334
    %v336 = vpop.xlane.xlu0 %335
    %v337 = vrot.slane %v336, 4
    %v338 = vadd.f32 %v336, %v337
    %v339 = vrot.slane %v338, 2
    %v340 = vadd.f32 %v338, %v339
    %v341 = vrot.slane %v340, 1
    %v342 = vadd.f32 %v340, %v341
    %s343 = vtos %v342
    %s344 = ssub.f32 0.0, %s343
    %s345 = scalar_lea.smem [#allocation13], 0
    %346 = sst [smem:[%s345]] %s344
    // Predicated region
    $region18: #{tpu_custom_call.1} parent=1 // pred_check
      _
    $region19: #{tpu_custom_call.1} parent=1 // pred_check_branch
      %348 = sbr.rel (0) target = $region21
    $region20: #{tpu_custom_call.1} parent=1 // pred_region
      %s350 = ssub.s32 16, 16
      %351 = vsyncadd [#allocation10], %s350
      %354 = dma.smem_to_hbm [#allocation13], 16, %s6, [#allocation10]
    $region21: #{tpu_custom_call.1} parent=1 // pred_fallthru
      _
    // Predicated region
    $region22: #{tpu_custom_call.1} parent=1 // pred_check
      _
    $region23: #{tpu_custom_call.1} parent=1 // pred_check_branch
      %356 = sbr.rel (0) target = $region25
    $region24: #{tpu_custom_call.1} parent=1 // pred_region
      %357 = dma.done [#allocation10], 16
    $region25: #{tpu_custom_call.1} parent=1 // pred_fallthru
      _
    %358 = sfence
    %359 = vsyncpa [#allocation9], 1
    %360 = vsyncpa [#allocation12], 1
    %361 = vsyncpa [#allocation10], 1

</llo_original>
